<compile_context>
chip_gen: v7x
topology: tpu7x:2x2x1
jax: 0.10.0
libtpu: 0.0.40
codegen_flags: <defaults>
</compile_context>

<pallas_src>
import functools

import jax
import jax.numpy as jnp
import numpy as np
from jax.experimental import pallas as pl
from jax.experimental.pallas import tpu as pltpu

EPS = 1e-6  # ConvNeXt-style LayerNorm eps


def _fused_convnext_kernel(xf_ref, wdw_ref, w1_ref, b1_ref, w2_ref, b2_ref,
                           out_ref, *, kh, kw, Wp, L):
    """One batch element.

    xf_ref : (1, C, Lin)  reflect-padded frame with rows flattened onto lanes
             (Lin = (Hp+1)*Wp, the extra row keeps every tap slice in bounds).
    out    : (1, C, L)    L = H*Wp (padded-width columns stripped by wrapper).
    """
    xf = xf_ref[0].astype(jnp.float32)          # (C, Lin)
    wdw = wdw_ref[...].astype(jnp.float32)      # (C, kh*kw)

    # Depthwise conv with reflect padding: tap (i, j) is a constant lane shift
    # of i*Wp + j in the flattened padded-width pixel axis.
    acc = None
    for i in range(kh):
        for j in range(kw):
            off = i * Wp + j
            t = i * kw + j
            contrib = xf[:, off:off + L] * wdw[:, t:t + 1]   # (C, L)
            acc = contrib if acc is None else acc + contrib

    # Per-pixel LayerNorm over the channel (sublane) axis.
    mean = jnp.mean(acc, axis=0, keepdims=True)              # (1, L)
    var = jnp.mean(jnp.square(acc - mean), axis=0, keepdims=True)
    xn = (acc - mean) * jax.lax.rsqrt(var + EPS)              # (C, L)
    # (The LayerNorm affine is folded into w1/b1 by the wrapper.)

    # Pointwise MLP with pixels on the lane axis (lane-dense outputs).
    h = jnp.dot(w1_ref[...].astype(jnp.float32), xn,
                preferred_element_type=jnp.float32)           # (Cm, L)
    h = h + b1_ref[...].astype(jnp.float32)                   # (Cm, 1) bias
    # Exact GELU (erf form) == torch.nn.GELU() default.
    h = 0.5 * h * (1.0 + jax.lax.erf(h * 0.7071067811865476))
    o = jnp.dot(w2_ref[...].astype(jnp.float32), h,
                preferred_element_type=jnp.float32)           # (C, L)
    o = o + b2_ref[...].astype(jnp.float32)                   # gamma folded in

    # Residual is just the centre tap of the padded input; drop_path(p=0)=id.
    ctr = (kh // 2) * Wp + (kw // 2)
    res = xf[:, ctr:ctr + L]
    out_ref[0] = (res + o).astype(out_ref.dtype)


def convnext_block_2d(x_nchw, params, *, kernel_size=(3, 3)):
    """ConvNeXtBlock2d forward. x_nchw: (B, C, H, W) -> (B, C, H, W)."""
    kh, kw = kernel_size
    B, C, H, W = x_nchw.shape
    p, q = kh // 2, kw // 2
    Hp, Wp = H + kh - 1, W + kw - 1
    L = H * Wp                      # flat output length (keeps W-pad columns)
    Lin = (Hp + 1) * Wp             # +1 extra reflect row so every tap's slice
                                    # of length L stays in bounds

    # Reflect pad in NCHW (one XLA pass), then a free contiguous reshape that
    # flattens padded rows onto the lane axis.  No transposes anywhere.
    xpad = jnp.pad(x_nchw, ((0, 0), (0, 0), (p, p + 1), (q, q)), mode="reflect")
    xf = xpad.reshape(B, C, Lin)

    f32 = jnp.float32
    Cm = params["w1"].shape[0]
    ln_w = params["ln_weight"].astype(f32)
    ln_b = params["ln_bias"].astype(f32)
    gamma = params.get("gamma")
    gamma = jnp.ones((C,), f32) if gamma is None else gamma.astype(f32)
    w1 = params["w1"].astype(f32)                     # (Cm, C)
    b1 = params["b1"].astype(f32)                     # (Cm,)
    w2 = params["w2"].astype(f32)                     # (C, Cm)
    b2 = params["b2"].astype(f32)                     # (C,)
    # Fold LN affine into pwconv1 and layer-scale gamma into pwconv2 (exact).
    w1f = w1 * ln_w[None, :]
    b1f = (w1 @ ln_b + b1).reshape(Cm, 1)
    w2f = w2 * gamma[:, None]
    b2f = (b2 * gamma).reshape(C, 1)
    wdw = params["dw_weight"].reshape(C, kh * kw).astype(f32)

    out_flat = pl.pallas_call(
        functools.partial(_fused_convnext_kernel, kh=kh, kw=kw, Wp=Wp, L=L),
        out_shape=jax.ShapeDtypeStruct((B, C, L), x_nchw.dtype),
        grid_spec=pltpu.PrefetchScalarGridSpec(
            num_scalar_prefetch=0,
            grid=(B,),
            in_specs=[
                pl.BlockSpec((1, C, Lin), lambda b: (b, 0, 0)),
                pl.BlockSpec((C, kh * kw), lambda b: (0, 0)),
                pl.BlockSpec((Cm, C), lambda b: (0, 0)),
                pl.BlockSpec((Cm, 1), lambda b: (0, 0)),
                pl.BlockSpec((C, Cm), lambda b: (0, 0)),
                pl.BlockSpec((C, 1), lambda b: (0, 0)),
            ],
            out_specs=pl.BlockSpec((1, C, L), lambda b: (b, 0, 0)),
        ),
        compiler_params=pltpu.CompilerParams(
            dimension_semantics=("parallel",),
            vmem_limit_bytes=48 * 1024 * 1024,   # headroom for bigger frames
        ),
    )(xf, wdw, w1f, b1f, w2f, b2f)

    # Strip the padded-width columns (one XLA slice pass) -> NCHW output.
    return out_flat.reshape(B, C, H, Wp)[:, :, :, :W]


# Pure-JAX reference (literal module math, no folding) for a sanity check.
def _reference(x, params, kernel_size):
    kh, kw = kernel_size
    B, C, H, W = x.shape
    p, q = kh // 2, kw // 2
    xpad = jnp.pad(x, ((0, 0), (0, 0), (p, p), (q, q)), mode="reflect")
    acc = jnp.zeros((B, C, H, W), jnp.float32)
    for i in range(kh):
        for j in range(kw):
            w_ij = params["dw_weight"][:, i, j][None, :, None, None]
            acc = acc + xpad[:, :, i:i + H, j:j + W] * w_ij
    mean = acc.mean(axis=1, keepdims=True)
    var = ((acc - mean) ** 2).mean(axis=1, keepdims=True)
    xn = (acc - mean) * jax.lax.rsqrt(var + EPS)
    xn = (xn * params["ln_weight"][None, :, None, None]
          + params["ln_bias"][None, :, None, None])
    h = (jnp.einsum("mc,bchw->bmhw", params["w1"], xn)
         + params["b1"][None, :, None, None])
    h = 0.5 * h * (1.0 + jax.lax.erf(h * 0.7071067811865476))
    o = (jnp.einsum("cm,bmhw->bchw", params["w2"], h)
         + params["b2"][None, :, None, None])
    o = o * params["gamma"][None, :, None, None]
    return x + o


if __name__ == "__main__":
    B, C, H, W = 2, 4, 16, 16
    mult_channels = 2
    ksize = 3
    layer_scale_init_value = 0.1
    Cm = C * mult_channels

    key = jax.random.PRNGKey(0)
    keys = jax.random.split(key, 8)
    x = jax.random.normal(keys[0], (B, C, H, W), jnp.float32)

    # Deterministic synthetic parameters (torch shapes, squeezed):
    #   dwconv.weight  (C,1,kh,kw) -> (C, kh, kw)
    #   pwconv1.weight (Cm,C,1,1)  -> (Cm, C); bias (Cm,)
    #   pwconv2.weight (C,Cm,1,1)  -> (C, Cm); bias (C,)
    params = {
        "dw_weight": 0.1 * jax.random.normal(keys[1], (C, ksize, ksize), jnp.float32),
        "ln_weight": 1.0 + 0.05 * jax.random.normal(keys[2], (C,), jnp.float32),
        "ln_bias": 0.05 * jax.random.normal(keys[3], (C,), jnp.float32),
        "w1": 0.1 * jax.random.normal(keys[4], (Cm, C), jnp.float32),
        "b1": 0.05 * jax.random.normal(keys[5], (Cm,), jnp.float32),
        "w2": 0.1 * jax.random.normal(keys[6], (C, Cm), jnp.float32),
        "b2": 0.05 * jax.random.normal(keys[7], (C,), jnp.float32),
        "gamma": layer_scale_init_value * jnp.ones((C,), jnp.float32),
    }

    fwd = jax.jit(lambda xx, pp: convnext_block_2d(xx, pp,
                                                   kernel_size=(ksize, ksize)))
    out = jax.block_until_ready(fwd(x, params))
    assert out.shape == (B, C, H, W) and out.dtype == jnp.float32

    ref = jax.block_until_ready(_reference(x, params, (ksize, ksize)))
    np.testing.assert_allclose(np.asarray(out), np.asarray(ref),
                               atol=2e-3, rtol=2e-3)

    print("KERNEL_OK")
</pallas_src>

<mosaic_0001>
module attributes {stable_mosaic.version = 11 : i64} {
  func.func @_fused_convnext_kernel(%arg0: i32, %arg1: memref<1x4x342xf32, #tpu.memory_space<vmem>>, %arg2: memref<4x9xf32, #tpu.memory_space<vmem>>, %arg3: memref<8x4xf32, #tpu.memory_space<vmem>>, %arg4: memref<8x1xf32, #tpu.memory_space<vmem>>, %arg5: memref<4x8xf32, #tpu.memory_space<vmem>>, %arg6: memref<4x1xf32, #tpu.memory_space<vmem>>, %arg7: memref<1x4x288xf32, #tpu.memory_space<vmem>>) attributes {dimension_semantics = [#tpu.dimension_semantics<parallel>], iteration_bounds = array<i64: 2>, scalar_prefetch = 0 : i64, scratch_operands = 0 : i64, tpu.core_type = #tpu.core_type<tc>, window_params = [{transform_indices = @transform_0, window_bounds = array<i64: 1, 4, 342>}, {pipeline_mode = #tpu.pipeline_mode<synchronous>, transform_indices = @transform_1, window_bounds = array<i64: 4, 9>}, {pipeline_mode = #tpu.pipeline_mode<synchronous>, transform_indices = @transform_2, window_bounds = array<i64: 8, 4>}, {pipeline_mode = #tpu.pipeline_mode<synchronous>, transform_indices = @transform_3, window_bounds = array<i64: 8, 1>}, {pipeline_mode = #tpu.pipeline_mode<synchronous>, transform_indices = @transform_4, window_bounds = array<i64: 4, 8>}, {pipeline_mode = #tpu.pipeline_mode<synchronous>, transform_indices = @transform_5, window_bounds = array<i64: 4, 1>}, {transform_indices = @transform_6, window_bounds = array<i64: 1, 4, 288>}]} {
    %c0 = arith.constant 0 : index
    %c0_0 = arith.constant 0 : index
    %c0_1 = arith.constant 0 : index
    %0 = vector.load %arg1[%c0, %c0_0, %c0_1] : memref<1x4x342xf32, #tpu.memory_space<vmem>>, vector<1x4x342xf32>
    %1 = vector.shape_cast %0 : vector<1x4x342xf32> to vector<4x342xf32>
    %c0_2 = arith.constant 0 : index
    %c0_3 = arith.constant 0 : index
    %2 = vector.load %arg2[%c0_2, %c0_3] : memref<4x9xf32, #tpu.memory_space<vmem>>, vector<4x9xf32>
    %3 = vector.extract_strided_slice %1 {offsets = [0, 0], sizes = [4, 288], strides = [1, 1]} : vector<4x342xf32> to vector<4x288xf32>
    %4 = vector.extract_strided_slice %2 {offsets = [0, 0], sizes = [4, 1], strides = [1, 1]} : vector<4x9xf32> to vector<4x1xf32>
    %5 = vector.broadcast %4 : vector<4x1xf32> to vector<4x288xf32>
    %6 = arith.mulf %3, %5 : vector<4x288xf32>
    %7 = vector.extract_strided_slice %1 {offsets = [0, 1], sizes = [4, 288], strides = [1, 1]} : vector<4x342xf32> to vector<4x288xf32>
    %8 = vector.extract_strided_slice %2 {offsets = [0, 1], sizes = [4, 1], strides = [1, 1]} : vector<4x9xf32> to vector<4x1xf32>
    %9 = vector.broadcast %8 : vector<4x1xf32> to vector<4x288xf32>
    %10 = arith.mulf %7, %9 : vector<4x288xf32>
    %11 = arith.addf %6, %10 : vector<4x288xf32>
    %12 = vector.extract_strided_slice %1 {offsets = [0, 2], sizes = [4, 288], strides = [1, 1]} : vector<4x342xf32> to vector<4x288xf32>
    %13 = vector.extract_strided_slice %2 {offsets = [0, 2], sizes = [4, 1], strides = [1, 1]} : vector<4x9xf32> to vector<4x1xf32>
    %14 = vector.broadcast %13 : vector<4x1xf32> to vector<4x288xf32>
    %15 = arith.mulf %12, %14 : vector<4x288xf32>
    %16 = arith.addf %11, %15 : vector<4x288xf32>
    %17 = vector.extract_strided_slice %1 {offsets = [0, 18], sizes = [4, 288], strides = [1, 1]} : vector<4x342xf32> to vector<4x288xf32>
    %18 = vector.extract_strided_slice %2 {offsets = [0, 3], sizes = [4, 1], strides = [1, 1]} : vector<4x9xf32> to vector<4x1xf32>
    %19 = vector.broadcast %18 : vector<4x1xf32> to vector<4x288xf32>
    %20 = arith.mulf %17, %19 : vector<4x288xf32>
    %21 = arith.addf %16, %20 : vector<4x288xf32>
    %22 = vector.extract_strided_slice %1 {offsets = [0, 19], sizes = [4, 288], strides = [1, 1]} : vector<4x342xf32> to vector<4x288xf32>
    %23 = vector.extract_strided_slice %2 {offsets = [0, 4], sizes = [4, 1], strides = [1, 1]} : vector<4x9xf32> to vector<4x1xf32>
    %24 = vector.broadcast %23 : vector<4x1xf32> to vector<4x288xf32>
    %25 = arith.mulf %22, %24 : vector<4x288xf32>
    %26 = arith.addf %21, %25 : vector<4x288xf32>
    %27 = vector.extract_strided_slice %1 {offsets = [0, 20], sizes = [4, 288], strides = [1, 1]} : vector<4x342xf32> to vector<4x288xf32>
    %28 = vector.extract_strided_slice %2 {offsets = [0, 5], sizes = [4, 1], strides = [1, 1]} : vector<4x9xf32> to vector<4x1xf32>
    %29 = vector.broadcast %28 : vector<4x1xf32> to vector<4x288xf32>
    %30 = arith.mulf %27, %29 : vector<4x288xf32>
    %31 = arith.addf %26, %30 : vector<4x288xf32>
    %32 = vector.extract_strided_slice %1 {offsets = [0, 36], sizes = [4, 288], strides = [1, 1]} : vector<4x342xf32> to vector<4x288xf32>
    %33 = vector.extract_strided_slice %2 {offsets = [0, 6], sizes = [4, 1], strides = [1, 1]} : vector<4x9xf32> to vector<4x1xf32>
    %34 = vector.broadcast %33 : vector<4x1xf32> to vector<4x288xf32>
    %35 = arith.mulf %32, %34 : vector<4x288xf32>
    %36 = arith.addf %31, %35 : vector<4x288xf32>
    %37 = vector.extract_strided_slice %1 {offsets = [0, 37], sizes = [4, 288], strides = [1, 1]} : vector<4x342xf32> to vector<4x288xf32>
    %38 = vector.extract_strided_slice %2 {offsets = [0, 7], sizes = [4, 1], strides = [1, 1]} : vector<4x9xf32> to vector<4x1xf32>
    %39 = vector.broadcast %38 : vector<4x1xf32> to vector<4x288xf32>
    %40 = arith.mulf %37, %39 : vector<4x288xf32>
    %41 = arith.addf %36, %40 : vector<4x288xf32>
    %42 = vector.extract_strided_slice %1 {offsets = [0, 38], sizes = [4, 288], strides = [1, 1]} : vector<4x342xf32> to vector<4x288xf32>
    %43 = vector.extract_strided_slice %2 {offsets = [0, 8], sizes = [4, 1], strides = [1, 1]} : vector<4x9xf32> to vector<4x1xf32>
    %44 = vector.broadcast %43 : vector<4x1xf32> to vector<4x288xf32>
    %45 = arith.mulf %42, %44 : vector<4x288xf32>
    %46 = arith.addf %41, %45 : vector<4x288xf32>
    %cst = arith.constant dense<0.000000e+00> : vector<288xf32>
    %47 = vector.multi_reduction <add>, %46, %cst [0] : vector<4x288xf32> to vector<288xf32>
    %48 = vector.shape_cast %47 : vector<288xf32> to vector<1x288xf32>
    %cst_4 = arith.constant 4.000000e+00 : f32
    %49 = vector.broadcast %cst_4 : f32 to vector<1x288xf32>
    %50 = arith.divf %48, %49 : vector<1x288xf32>
    %51 = vector.broadcast %50 : vector<1x288xf32> to vector<4x288xf32>
    %52 = arith.subf %46, %51 : vector<4x288xf32>
    %53 = arith.mulf %52, %52 : vector<4x288xf32>
    %cst_5 = arith.constant dense<0.000000e+00> : vector<288xf32>
    %54 = vector.multi_reduction <add>, %53, %cst_5 [0] : vector<4x288xf32> to vector<288xf32>
    %55 = vector.shape_cast %54 : vector<288xf32> to vector<1x288xf32>
    %cst_6 = arith.constant 4.000000e+00 : f32
    %56 = vector.broadcast %cst_6 : f32 to vector<1x288xf32>
    %57 = arith.divf %55, %56 : vector<1x288xf32>
    %58 = vector.broadcast %50 : vector<1x288xf32> to vector<4x288xf32>
    %59 = arith.subf %46, %58 : vector<4x288xf32>
    %cst_7 = arith.constant 9.99999997E-7 : f32
    %60 = vector.broadcast %cst_7 : f32 to vector<1x288xf32>
    %61 = arith.addf %57, %60 : vector<1x288xf32>
    %62 = math.rsqrt %61 : vector<1x288xf32>
    %63 = vector.broadcast %62 : vector<1x288xf32> to vector<4x288xf32>
    %64 = arith.mulf %59, %63 : vector<4x288xf32>
    %c0_8 = arith.constant 0 : index
    %c0_9 = arith.constant 0 : index
    %65 = vector.load %arg3[%c0_8, %c0_9] : memref<8x4xf32, #tpu.memory_space<vmem>>, vector<8x4xf32>
    %cst_10 = arith.constant dense<0.000000e+00> : vector<8x288xf32>
    %66 = tpu.matmul %65, %64, %cst_10 {dimension_numbers = #tpu.dot_dimension_numbers<[1], [0], [0], [1], [0, 0, 1, 1], [], []>} : vector<8x4xf32>, vector<4x288xf32>, vector<8x288xf32> -> vector<8x288xf32>
    %c0_11 = arith.constant 0 : index
    %c0_12 = arith.constant 0 : index
    %67 = vector.load %arg4[%c0_11, %c0_12] : memref<8x1xf32, #tpu.memory_space<vmem>>, vector<8x1xf32>
    %68 = vector.broadcast %67 : vector<8x1xf32> to vector<8x288xf32>
    %69 = arith.addf %66, %68 : vector<8x288xf32>
    %cst_13 = arith.constant 5.000000e-01 : f32
    %70 = vector.broadcast %cst_13 : f32 to vector<8x288xf32>
    %71 = arith.mulf %70, %69 : vector<8x288xf32>
    %cst_14 = arith.constant 0.707106769 : f32
    %72 = vector.broadcast %cst_14 : f32 to vector<8x288xf32>
    %73 = arith.mulf %69, %72 : vector<8x288xf32>
    %74 = math.erf %73 : vector<8x288xf32>
    %cst_15 = arith.constant 1.000000e+00 : f32
    %75 = vector.broadcast %cst_15 : f32 to vector<8x288xf32>
    %76 = arith.addf %75, %74 : vector<8x288xf32>
    %77 = arith.mulf %71, %76 : vector<8x288xf32>
    %c0_16 = arith.constant 0 : index
    %c0_17 = arith.constant 0 : index
    %78 = vector.load %arg5[%c0_16, %c0_17] : memref<4x8xf32, #tpu.memory_space<vmem>>, vector<4x8xf32>
    %cst_18 = arith.constant dense<0.000000e+00> : vector<4x288xf32>
    %79 = tpu.matmul %78, %77, %cst_18 {dimension_numbers = #tpu.dot_dimension_numbers<[1], [0], [0], [1], [0, 0, 1, 1], [], []>} : vector<4x8xf32>, vector<8x288xf32>, vector<4x288xf32> -> vector<4x288xf32>
    %c0_19 = arith.constant 0 : index
    %c0_20 = arith.constant 0 : index
    %80 = vector.load %arg6[%c0_19, %c0_20] : memref<4x1xf32, #tpu.memory_space<vmem>>, vector<4x1xf32>
    %81 = vector.broadcast %80 : vector<4x1xf32> to vector<4x288xf32>
    %82 = arith.addf %79, %81 : vector<4x288xf32>
    %83 = vector.extract_strided_slice %1 {offsets = [0, 19], sizes = [4, 288], strides = [1, 1]} : vector<4x342xf32> to vector<4x288xf32>
    %84 = arith.addf %83, %82 : vector<4x288xf32>
    %c0_21 = arith.constant 0 : index
    %c0_22 = arith.constant 0 : index
    %c0_23 = arith.constant 0 : index
    %85 = vector.load %arg7[%c0_21, %c0_22, %c0_23] : memref<1x4x288xf32, #tpu.memory_space<vmem>>, vector<1x4x288xf32>
    %86 = vector.shape_cast %85 : vector<1x4x288xf32> to vector<4x288xf32>
    %87 = vector.shape_cast %84 : vector<4x288xf32> to vector<1x4x288xf32>
    tpu.vector_store %arg7[%c0_21, %c0_22, %c0_23], %87 {strides = array<i32>} : memref<1x4x288xf32, #tpu.memory_space<vmem>>, vector<1x4x288xf32>,
    return
  }
  func.func @transform_0(%arg0: i32) -> (i32, i32, i32) {
    %c0_i32 = arith.constant 0 : i32
    %c0_i32_0 = arith.constant 0 : i32
    %c0_i32_1 = arith.constant 0 : i32
    return %arg0, %c0_i32, %c0_i32_0 : i32, i32, i32
  }
  func.func @transform_1(%arg0: i32) -> (i32, i32) {
    %c0_i32 = arith.constant 0 : i32
    %c0_i32_0 = arith.constant 0 : i32
    %c0_i32_1 = arith.constant 0 : i32
    return %c0_i32, %c0_i32_0 : i32, i32
  }
  func.func @transform_2(%arg0: i32) -> (i32, i32) {
    %c0_i32 = arith.constant 0 : i32
    %c0_i32_0 = arith.constant 0 : i32
    %c0_i32_1 = arith.constant 0 : i32
    return %c0_i32, %c0_i32_0 : i32, i32
  }
  func.func @transform_3(%arg0: i32) -> (i32, i32) {
    %c0_i32 = arith.constant 0 : i32
    %c0_i32_0 = arith.constant 0 : i32
    %c0_i32_1 = arith.constant 0 : i32
    return %c0_i32, %c0_i32_0 : i32, i32
  }
  func.func @transform_4(%arg0: i32) -> (i32, i32) {
    %c0_i32 = arith.constant 0 : i32
    %c0_i32_0 = arith.constant 0 : i32
    %c0_i32_1 = arith.constant 0 : i32
    return %c0_i32, %c0_i32_0 : i32, i32
  }
  func.func @transform_5(%arg0: i32) -> (i32, i32) {
    %c0_i32 = arith.constant 0 : i32
    %c0_i32_0 = arith.constant 0 : i32
    %c0_i32_1 = arith.constant 0 : i32
    return %c0_i32, %c0_i32_0 : i32, i32
  }
  func.func @transform_6(%arg0: i32) -> (i32, i32, i32) {
    %c0_i32 = arith.constant 0 : i32
    %c0_i32_0 = arith.constant 0 : i32
    %c0_i32_1 = arith.constant 0 : i32
    return %arg0, %c0_i32, %c0_i32_0 : i32, i32, i32
  }
}

</mosaic_0001>

<llo_original>
// kernel: _lambda_.1
$region0: #{_lambda_.1}
  #allocation0 [shape = 'u32[]', space=smem, size = 0x4, offset = 0x4, fixed_abs, tag = 'smem constant byte address 0x4 - core index']
  #allocation1 [shape = 'u32[144,128]{1,0:T(1,128)}', space=vmem, size = 0x12000, scoped, tag = 'internal scratch']
  %s0 = inlined_call_operand.vmem [shape: f32[2,4,342], index: 0, kind: input, shape index: {}]
  %s1 = inlined_call_operand.vmem [shape: f32[4,9], index: 1, kind: input, shape index: {}]
  %s2 = inlined_call_operand.vmem [shape: f32[8,4], index: 2, kind: input, shape index: {}]
  %s3 = inlined_call_operand.vmem [shape: f32[8,1], index: 3, kind: input, shape index: {}]
  %s4 = inlined_call_operand.vmem [shape: f32[4,8], index: 4, kind: input, shape index: {}]
  %s5 = inlined_call_operand.vmem [shape: f32[4,1], index: 5, kind: input, shape index: {}]
  %s6 = inlined_call_operand.vmem [shape: f32[2,4,288], index: 6, kind: output, shape index: {}]
  %s7 = sld [smem:[#allocation0]]
  $region57: #{_lambda_.1} parent=0
    _
  %s9 = ssub.s32 1, %s7
  %s10 = scalar_select 0, %s9, %s7
  loop: start=0, step=1, limit=4
  $region2: #{_lambda_.1} parent=0 // loop_pre_header
    _
  $region3: #{_lambda_.1} parent=0 // loop_header
    %s12 = sphi 0, %s16
    %p13 = scmp.ge.s32.totalorder %s12, 4
    %s22 = sphi 0, %s24
    %s25 = sphi 0, %s22
    %s26 = sphi 0, %s25
    %s42 = sphi 0, %s26
    %s46 = sphi 0, %s46
    %s48 = sphi 0, %s46
    %s49 = sphi 0, %s48
    %s63 = sphi 0, %s49
    %s67 = sphi 0, %s67
    %s69 = sphi 0, %s67
    %s70 = sphi 0, %s69
    %s84 = sphi 0, %s70
    %s88 = sphi 0, %s88
    %s90 = sphi 0, %s88
    %s91 = sphi 0, %s90
    %s105 = sphi 0, %s91
    %s109 = sphi 0, %s109
    %s111 = sphi 0, %s109
    %s112 = sphi 0, %s111
    %s126 = sphi 0, %s112
    %s130 = sphi 0, %s130
    %s132 = sphi 0, %s130
    %s133 = sphi 0, %s132
    %s147 = sphi 0, %s133
    %s153 = sphi 0, %s155
    %s156 = sphi 0, %s153
    %s157 = sphi 0, %s156
    %s173 = sphi 0, %s157
  $region4: #{_lambda_.1} parent=0 // loop_header_branch
    %15 = sbr.rel (%p13) target = $region8
  $region5: #{_lambda_.1} parent=0 // loop_body
    %s17 = ssub.s32 %s12, 1
    %s18 = ssub.s32 %s12, 2
    %s19 = sadd.s32 %s12, 1
    %s20 = ssub.s32 %s12, %s19
    %p21 = scmp.eq.s32.totalorder %s20, 0
    %s23 = sadd.s32 %s22, 1
    %s24 = scalar_select %p21, %s22, %s23
    %p27 = pneg %p21
    %p28 = scmp.eq.s32.totalorder %s12, 1
    %p29 = por %p27, %p28
    %p30 = scmp.ne.s32.totalorder %s22, %s25
    %p31 = scmp.eq.s32.totalorder %s12, 0
    %p32 = por %p30, %p31
    %p33 = scmp.ne.s32.totalorder %s22, %s25
    %p34 = scmp.eq.s32.totalorder %s17, 1
    %p35 = por %p33, %p34
    %p36 = scmp.ne.s32.totalorder %s25, %s26
    %p37 = scmp.eq.s32.totalorder %s17, 0
    %p38 = por %p36, %p37
    %p39 = scmp.ne.s32.totalorder %s25, %s26
    %p40 = scmp.eq.s32.totalorder %s18, 1
    %p41 = por %p39, %p40
    %p43 = scmp.ne.s32.totalorder %s26, %s42
    %p44 = scmp.eq.s32.totalorder %s18, 0
    %p45 = por %p43, %p44
    %s47 = sadd.s32 %s46, 1
    %p50 = scmp.eq.s32.totalorder %s12, 1
    %p51 = scmp.ne.s32.totalorder %s46, %s48
    %p52 = scmp.eq.s32.totalorder %s12, 0
    %p53 = por %p51, %p52
    %p54 = scmp.ne.s32.totalorder %s46, %s48
    %p55 = scmp.eq.s32.totalorder %s17, 1
    %p56 = por %p54, %p55
    %p57 = scmp.ne.s32.totalorder %s48, %s49
    %p58 = scmp.eq.s32.totalorder %s17, 0
    %p59 = por %p57, %p58
    %p60 = scmp.ne.s32.totalorder %s48, %s49
    %p61 = scmp.eq.s32.totalorder %s18, 1
    %p62 = por %p60, %p61
    %p64 = scmp.ne.s32.totalorder %s49, %s63
    %p65 = scmp.eq.s32.totalorder %s18, 0
    %p66 = por %p64, %p65
    %s68 = sadd.s32 %s67, 1
    %p71 = scmp.eq.s32.totalorder %s12, 1
    %p72 = scmp.ne.s32.totalorder %s67, %s69
    %p73 = scmp.eq.s32.totalorder %s12, 0
    %p74 = por %p72, %p73
    %p75 = scmp.ne.s32.totalorder %s67, %s69
    %p76 = scmp.eq.s32.totalorder %s17, 1
    %p77 = por %p75, %p76
    %p78 = scmp.ne.s32.totalorder %s69, %s70
    %p79 = scmp.eq.s32.totalorder %s17, 0
    %p80 = por %p78, %p79
    %p81 = scmp.ne.s32.totalorder %s69, %s70
    %p82 = scmp.eq.s32.totalorder %s18, 1
    %p83 = por %p81, %p82
    %p85 = scmp.ne.s32.totalorder %s70, %s84
    %p86 = scmp.eq.s32.totalorder %s18, 0
    %p87 = por %p85, %p86
    %s89 = sadd.s32 %s88, 1
    %p92 = scmp.eq.s32.totalorder %s12, 1
    %p93 = scmp.ne.s32.totalorder %s88, %s90
    %p94 = scmp.eq.s32.totalorder %s12, 0
    %p95 = por %p93, %p94
    %p96 = scmp.ne.s32.totalorder %s88, %s90
    %p97 = scmp.eq.s32.totalorder %s17, 1
    %p98 = por %p96, %p97
    %p99 = scmp.ne.s32.totalorder %s90, %s91
    %p100 = scmp.eq.s32.totalorder %s17, 0
    %p101 = por %p99, %p100
    %p102 = scmp.ne.s32.totalorder %s90, %s91
    %p103 = scmp.eq.s32.totalorder %s18, 1
    %p104 = por %p102, %p103
    %p106 = scmp.ne.s32.totalorder %s91, %s105
    %p107 = scmp.eq.s32.totalorder %s18, 0
    %p108 = por %p106, %p107
    %s110 = sadd.s32 %s109, 1
    %p113 = scmp.eq.s32.totalorder %s12, 1
    %p114 = scmp.ne.s32.totalorder %s109, %s111
    %p115 = scmp.eq.s32.totalorder %s12, 0
    %p116 = por %p114, %p115
    %p117 = scmp.ne.s32.totalorder %s109, %s111
    %p118 = scmp.eq.s32.totalorder %s17, 1
    %p119 = por %p117, %p118
    %p120 = scmp.ne.s32.totalorder %s111, %s112
    %p121 = scmp.eq.s32.totalorder %s17, 0
    %p122 = por %p120, %p121
    %p123 = scmp.ne.s32.totalorder %s111, %s112
    %p124 = scmp.eq.s32.totalorder %s18, 1
    %p125 = por %p123, %p124
    %p127 = scmp.ne.s32.totalorder %s112, %s126
    %p128 = scmp.eq.s32.totalorder %s18, 0
    %p129 = por %p127, %p128
    %s131 = sadd.s32 %s130, 1
    %p134 = scmp.eq.s32.totalorder %s12, 1
    %p135 = scmp.ne.s32.totalorder %s130, %s132
    %p136 = scmp.eq.s32.totalorder %s12, 0
    %p137 = por %p135, %p136
    %p138 = scmp.ne.s32.totalorder %s130, %s132
    %p139 = scmp.eq.s32.totalorder %s17, 1
    %p140 = por %p138, %p139
    %p141 = scmp.ne.s32.totalorder %s132, %s133
    %p142 = scmp.eq.s32.totalorder %s17, 0
    %p143 = por %p141, %p142
    %p144 = scmp.ne.s32.totalorder %s132, %s133
    %p145 = scmp.eq.s32.totalorder %s18, 1
    %p146 = por %p144, %p145
    %p148 = scmp.ne.s32.totalorder %s133, %s147
    %p149 = scmp.eq.s32.totalorder %s18, 0
    %p150 = por %p148, %p149
    %s151 = ssub.s32 %s12, %s19
    %p152 = scmp.eq.s32.totalorder %s151, 0
    %s154 = sadd.s32 %s153, 1
    %s155 = scalar_select %p152, %s153, %s154
    %p158 = pneg %p152
    %p159 = scmp.eq.s32.totalorder %s12, 1
    %p160 = por %p158, %p159
    %p161 = scmp.ne.s32.totalorder %s153, %s156
    %p162 = scmp.eq.s32.totalorder %s12, 0
    %p163 = por %p161, %p162
    %p164 = scmp.ne.s32.totalorder %s153, %s156
    %p165 = scmp.eq.s32.totalorder %s17, 1
    %p166 = por %p164, %p165
    %p167 = scmp.ne.s32.totalorder %s156, %s157
    %p168 = scmp.eq.s32.totalorder %s17, 0
    %p169 = por %p167, %p168
    %p170 = scmp.ne.s32.totalorder %s156, %s157
    %p171 = scmp.eq.s32.totalorder %s18, 1
    %p172 = por %p170, %p171
    %p174 = scmp.ne.s32.totalorder %s157, %s173
    %p175 = scmp.eq.s32.totalorder %s18, 0
    %p176 = por %p174, %p175
    %p177 = scmp.le.s32.totalorder 1, %s12
    %p178 = scmp.lt.s32.totalorder %s12, 3
    %p179 = pnand %p177, %p178
    %p180 = pneg %p179
    // Predicated region
    $region9: #{_lambda_.1} parent=5 // pred_check
      _
    $region10: #{_lambda_.1} parent=5 // pred_check_branch
      %182 = sbr.rel (%p179) target = $region12
    $region11: #{_lambda_.1} parent=5 // pred_region
      %s183 = ssub.s32 %s12, 1
      // Predicated region
      $region13: #{_lambda_.1} parent=11 // pred_check
        %p184 = pneg %p59
      $region14: #{_lambda_.1} parent=11 // pred_check_branch
        %186 = sbr.rel (%p184) target = $region16
      $region15: #{_lambda_.1} parent=11 // pred_region
        _
      $region16: #{_lambda_.1} parent=11 // pred_fallthru
        _
      // Predicated region
      $region17: #{_lambda_.1} parent=11 // pred_check
        %p187 = pneg %p80
      $region18: #{_lambda_.1} parent=11 // pred_check_branch
        %189 = sbr.rel (%p187) target = $region20
      $region19: #{_lambda_.1} parent=11 // pred_region
        _
      $region20: #{_lambda_.1} parent=11 // pred_fallthru
        _
      // Predicated region
      $region21: #{_lambda_.1} parent=11 // pred_check
        %p190 = pneg %p101
      $region22: #{_lambda_.1} parent=11 // pred_check_branch
        %192 = sbr.rel (%p190) target = $region24
      $region23: #{_lambda_.1} parent=11 // pred_region
        _
      $region24: #{_lambda_.1} parent=11 // pred_fallthru
        _
      // Predicated region
      $region25: #{_lambda_.1} parent=11 // pred_check
        %p193 = pneg %p122
      $region26: #{_lambda_.1} parent=11 // pred_check_branch
        %195 = sbr.rel (%p193) target = $region28
      $region27: #{_lambda_.1} parent=11 // pred_region
        _
      $region28: #{_lambda_.1} parent=11 // pred_fallthru
        _
      // Predicated region
      $region29: #{_lambda_.1} parent=11 // pred_check
        %p196 = pneg %p143
      $region30: #{_lambda_.1} parent=11 // pred_check_branch
        %198 = sbr.rel (%p196) target = $region32
      $region31: #{_lambda_.1} parent=11 // pred_region
        _
      $region32: #{_lambda_.1} parent=11 // pred_fallthru
        _
    $region12: #{_lambda_.1} parent=5 // pred_fallthru
      _
    %p199 = scmp.lt.s32.totalorder %s12, 2
    // Predicated region
    $region33: #{_lambda_.1} parent=5 // pred_check
      %p200 = pneg %p199
    $region34: #{_lambda_.1} parent=5 // pred_check_branch
      %202 = sbr.rel (%p200) target = $region36
    $region35: #{_lambda_.1} parent=5 // pred_region
      // Predicated region
      $region37: #{_lambda_.1} parent=35 // pred_check
        %p203 = pneg %p32
      $region38: #{_lambda_.1} parent=35 // pred_check_branch
        %205 = sbr.rel (%p203) target = $region40
      $region39: #{_lambda_.1} parent=35 // pred_region
        %p206 = scmp.lt.s32.totalorder %s12, 1
        %s207 = scalar_select %p206, %s12, 1
        %s208 = smul.addr %s207, 3
        %s209 = smul.addr %s208, 4
        %s210 = scalar_lea.vmem %s0, %s209
      $region40: #{_lambda_.1} parent=35 // pred_fallthru
        _
    $region36: #{_lambda_.1} parent=5 // pred_fallthru
      _
    %p211 = scmp.le.s32.totalorder 1, %s12
    %p212 = scmp.lt.s32.totalorder %s12, 3
    %p213 = pnand %p211, %p212
    %p214 = pneg %p213
    // Predicated region
    $region41: #{_lambda_.1} parent=5 // pred_check
      _
    $region42: #{_lambda_.1} parent=5 // pred_check_branch
      %216 = sbr.rel (%p213) target = $region44
    $region43: #{_lambda_.1} parent=5 // pred_region
      %s217 = ssub.s32 %s12, 1
      %p218 = scmp.lt.s32.totalorder %s17, 1
      %s219 = scalar_select %p218, %s17, 1
      %s220 = smul.addr %s219, 3
      %s221 = smul.addr %s220, 4
      %s222 = scalar_lea.vmem %s0, %s221
      %p223 = pneg %p38
      %p224 = pneg %p35
      %p225 = pneg %p59
      %p226 = pneg %p56
      %p227 = pneg %p80
      %p228 = pneg %p77
      %p229 = pneg %p101
      %p230 = pneg %p98
      %p231 = pneg %p122
      %p232 = pneg %p119
      %p233 = pneg %p143
      %p234 = pneg %p140
      %p235 = pneg %p169
      %p236 = pneg %p166
      %p237 = scmp.lt.s32.totalorder %s17, 1
      %s238 = scalar_select %p237, %s17, 1
      %s239 = smul.addr %s238, 3
      %s240 = smul.addr %s239, 4
      %s241 = scalar_lea.vmem %s6, %s240
      %p242 = scmp.lt.s32.totalorder %s17, 1
      %s243 = scalar_select %p242, %s17, 1
      %s244 = smul.addr %s243, 3
      %s245 = smul.addr %s244, 4
      %s246 = scalar_lea.vmem %s0, %s245
      %p247 = scmp.lt.s32.totalorder %s17, 1
      %s248 = scalar_select %p247, %s17, 1
      %s249 = smul.addr %s248, 3
      %s250 = smul.addr %s249, 4
      %s251 = scalar_lea.vmem %s6, %s250
      %v252 = vld [vmem:[%s246] sm:$0xff]
      %v253 = vld [vmem:[%s246 + $0x8] sm:$0xf]
      %v254 = vld [vmem:[%s1] sm:$0xf]
      %256 = vset.pattern.permute.xlu0 0
      %257 = vperm.xlu0 %256, %v254
      %v258 = vpop.permute.xlu0 %257
      %v260 = vunpack.c.l.s4 839922192
      %v261 = vunpack.c.0.s8 %v260
      %v262 = vlaneseq
      %v263 = vshrl.u32 %v262, 7
      %v264 = vsub.s32 %v261, %v263
      %v265 = vrot.slane %v258, %v264
      %v267 = vmul.f32 %v252, %v265
      %v268 = vmul.f32 %v253, %v265
      %269 = vset.pattern.permute.xlu0 1
      %270 = vperm.xlu0 %269, %v254
      %v271 = vpop.permute.xlu0 %270
      %v273 = vunpack.c.l.s4 839922192
      %v274 = vunpack.c.0.s8 %v273
      %v275 = vlaneseq
      %v276 = vshrl.u32 %v275, 7
      %v277 = vsub.s32 %v274, %v276
      %v278 = vrot.slane %v271, %v277
      %v280 = vmul.f32 %v252, %v278
      %v281 = vmul.f32 %v253, %v278
      %284 = vrot.lane.b32.xlu0 %v280, 127
      %v285 = vpop.permute.xlu0 %284
      %286 = vrot.lane.b32.xlu0 %v281, 127
      %v287 = vpop.permute.xlu0 %286
      %v288 = vrot.slane %v285, 4
      %v289 = vrot.slane %v287, 4
      %vm290 = vcmask 1043456
      %v291 = vsel %vm290, %v288, %v289
      %vm292 = vcmask 1039360
      %v293 = vsel %vm292, %v285, %v291
      %v296 = vadd.f32 %v267, %v293
      %v297 = vadd.f32 %v268, %v287
      %298 = vset.pattern.permute.xlu0 2
      %299 = vperm.xlu0 %298, %v254
      %v300 = vpop.permute.xlu0 %299
      %v302 = vunpack.c.l.s4 839922192
      %v303 = vunpack.c.0.s8 %v302
      %v304 = vlaneseq
      %v305 = vshrl.u32 %v304, 7
      %v306 = vsub.s32 %v303, %v305
      %v307 = vrot.slane %v300, %v306
      %v309 = vmul.f32 %v252, %v307
      %v310 = vmul.f32 %v253, %v307
      %313 = vrot.lane.b32.xlu0 %v309, 126
      %v314 = vpop.permute.xlu0 %313
      %315 = vrot.lane.b32.xlu0 %v310, 126
      %v316 = vpop.permute.xlu0 %315
      %v317 = vrot.slane %v314, 4
      %v318 = vrot.slane %v316, 4
      %v319 = vsel %vm290, %v317, %v318
      %vm320 = vcmask 1031168
      %v321 = vsel %vm320, %v314, %v319
      %v324 = vadd.f32 %v296, %v321
      %v325 = vadd.f32 %v297, %v316
      %326 = vset.pattern.permute.xlu0 3
      %327 = vperm.xlu0 %326, %v254
      %v328 = vpop.permute.xlu0 %327
      %v330 = vunpack.c.l.s4 839922192
      %v331 = vunpack.c.0.s8 %v330
      %v332 = vlaneseq
      %v333 = vshrl.u32 %v332, 7
      %v334 = vsub.s32 %v331, %v333
      %v335 = vrot.slane %v328, %v334
      %v337 = vmul.f32 %v252, %v335
      %v338 = vmul.f32 %v253, %v335
      %341 = vrot.lane.b32.xlu0 %v337, 110
      %v342 = vpop.permute.xlu0 %341
      %343 = vrot.lane.b32.xlu0 %v338, 110
      %v344 = vpop.permute.xlu0 %343
      %v345 = vrot.slane %v342, 4
      %v346 = vrot.slane %v344, 4
      %v347 = vsel %vm290, %v345, %v346
      %vm348 = vcmask 900096
      %v349 = vsel %vm348, %v342, %v347
      %v352 = vadd.f32 %v324, %v349
      %v353 = vadd.f32 %v325, %v344
      %354 = vset.pattern.permute.xlu0 4
      %355 = vperm.xlu0 %354, %v254
      %v356 = vpop.permute.xlu0 %355
      %v358 = vunpack.c.l.s4 839922192
      %v359 = vunpack.c.0.s8 %v358
      %v360 = vlaneseq
      %v361 = vshrl.u32 %v360, 7
      %v362 = vsub.s32 %v359, %v361
      %v363 = vrot.slane %v356, %v362
      %v365 = vmul.f32 %v252, %v363
      %v366 = vmul.f32 %v253, %v363
      %369 = vrot.lane.b32.xlu0 %v365, 109
      %v370 = vpop.permute.xlu0 %369
      %371 = vrot.lane.b32.xlu0 %v366, 109
      %v372 = vpop.permute.xlu0 %371
      %v373 = vrot.slane %v370, 4
      %v374 = vrot.slane %v372, 4
      %v375 = vsel %vm290, %v373, %v374
      %vm376 = vcmask 891904
      %v377 = vsel %vm376, %v370, %v375
      %v380 = vadd.f32 %v352, %v377
      %v381 = vadd.f32 %v353, %v372
      %382 = vset.pattern.permute.xlu0 5
      %383 = vperm.xlu0 %382, %v254
      %v384 = vpop.permute.xlu0 %383
      %v386 = vunpack.c.l.s4 839922192
      %v387 = vunpack.c.0.s8 %v386
      %v388 = vlaneseq
      %v389 = vshrl.u32 %v388, 7
      %v390 = vsub.s32 %v387, %v389
      %v391 = vrot.slane %v384, %v390
      %v393 = vmul.f32 %v252, %v391
      %v394 = vmul.f32 %v253, %v391
      %397 = vrot.lane.b32.xlu0 %v393, 108
      %v398 = vpop.permute.xlu0 %397
      %399 = vrot.lane.b32.xlu0 %v394, 108
      %v400 = vpop.permute.xlu0 %399
      %v401 = vrot.slane %v398, 4
      %v402 = vrot.slane %v400, 4
      %v403 = vsel %vm290, %v401, %v402
      %vm404 = vcmask 883712
      %v405 = vsel %vm404, %v398, %v403
      %v408 = vadd.f32 %v380, %v405
      %v409 = vadd.f32 %v381, %v400
      %410 = vset.pattern.permute.xlu0 6
      %411 = vperm.xlu0 %410, %v254
      %v412 = vpop.permute.xlu0 %411
      %v414 = vunpack.c.l.s4 839922192
      %v415 = vunpack.c.0.s8 %v414
      %v416 = vlaneseq
      %v417 = vshrl.u32 %v416, 7
      %v418 = vsub.s32 %v415, %v417
      %v419 = vrot.slane %v412, %v418
      %v421 = vmul.f32 %v252, %v419
      %v422 = vmul.f32 %v253, %v419
      %425 = vrot.lane.b32.xlu0 %v421, 92
      %v426 = vpop.permute.xlu0 %425
      %427 = vrot.lane.b32.xlu0 %v422, 92
      %v428 = vpop.permute.xlu0 %427
      %v429 = vrot.slane %v426, 4
      %v430 = vrot.slane %v428, 4
      %v431 = vsel %vm290, %v429, %v430
      %vm432 = vcmask 752640
      %v433 = vsel %vm432, %v426, %v431
      %v436 = vadd.f32 %v408, %v433
      %v437 = vadd.f32 %v409, %v428
      %438 = vset.pattern.permute.xlu0 7
      %439 = vperm.xlu0 %438, %v254
      %v440 = vpop.permute.xlu0 %439
      %v442 = vunpack.c.l.s4 839922192
      %v443 = vunpack.c.0.s8 %v442
      %v444 = vlaneseq
      %v445 = vshrl.u32 %v444, 7
      %v446 = vsub.s32 %v443, %v445
      %v447 = vrot.slane %v440, %v446
      %v449 = vmul.f32 %v252, %v447
      %v450 = vmul.f32 %v253, %v447
      %453 = vrot.lane.b32.xlu0 %v449, 91
      %v454 = vpop.permute.xlu0 %453
      %455 = vrot.lane.b32.xlu0 %v450, 91
      %v456 = vpop.permute.xlu0 %455
      %v457 = vrot.slane %v454, 4
      %v458 = vrot.slane %v456, 4
      %v459 = vsel %vm290, %v457, %v458
      %vm460 = vcmask 744448
      %v461 = vsel %vm460, %v454, %v459
      %v464 = vadd.f32 %v436, %v461
      %v465 = vadd.f32 %v437, %v456
      %466 = vset.pattern.permute.xlu0 8
      %467 = vperm.xlu0 %466, %v254
      %v468 = vpop.permute.xlu0 %467
      %v470 = vunpack.c.l.s4 839922192
      %v471 = vunpack.c.0.s8 %v470
      %v472 = vlaneseq
      %v473 = vshrl.u32 %v472, 7
      %v474 = vsub.s32 %v471, %v473
      %v475 = vrot.slane %v468, %v474
      %v477 = vmul.f32 %v252, %v475
      %v478 = vmul.f32 %v253, %v475
      %481 = vrot.lane.b32.xlu0 %v477, 90
      %v482 = vpop.permute.xlu0 %481
      %483 = vrot.lane.b32.xlu0 %v478, 90
      %v484 = vpop.permute.xlu0 %483
      %v485 = vrot.slane %v482, 4
      %v486 = vrot.slane %v484, 4
      %v487 = vsel %vm290, %v485, %v486
      %vm488 = vcmask 736256
      %v489 = vsel %vm488, %v482, %v487
      %v492 = vadd.f32 %v464, %v489
      %v493 = vadd.f32 %v465, %v484
      %v495 = vcombine.high %v492, %v492
      %v497 = vsel %vm290, %v492, 0.0
      %v498 = vrot.slane %v497, 4
      %v499 = vadd.f32 %v497, %v498
      %v500 = vrot.slane %v499, 2
      %v501 = vadd.f32 %v499, %v500
      %v502 = vrot.slane %v501, 1
      %v503 = vadd.f32 %v501, %v502
      %v504 = vsel %vm290, %v495, 0.0
      %v505 = vrot.slane %v504, 4
      %v506 = vadd.f32 %v504, %v505
      %v507 = vrot.slane %v506, 2
      %v508 = vadd.f32 %v506, %v507
      %v509 = vrot.slane %v508, 1
      %v510 = vadd.f32 %v508, %v509
      %vm511 = vcmask 257024
      %v512 = vsel %vm511, %v493, 0.0
      %v513 = vrot.slane %v512, 4
      %v514 = vadd.f32 %v512, %v513
      %v515 = vrot.slane %v514, 2
      %v516 = vadd.f32 %v514, %v515
      %v517 = vrot.slane %v516, 1
      %v518 = vadd.f32 %v516, %v517
      %v519 = vrcp.pop 4.0
      %v520 = vmul.f32 %v503, %v519
      %v521 = vmul.f32 %v510, %v519
      %v522 = vmul.f32 %v518, %v519
      %v525 = vcombine.low %v520, %v521
      %v527 = vsub.f32 %v492, %v525
      %v528 = vsub.f32 %v493, %v522
      %v529 = vmul.f32 %v527, %v527
      %v530 = vmul.f32 %v528, %v528
      %v532 = vcombine.high %v529, %v529
      %v534 = vsel %vm290, %v529, 0.0
      %v535 = vrot.slane %v534, 4
      %v536 = vadd.f32 %v534, %v535
      %v537 = vrot.slane %v536, 2
      %v538 = vadd.f32 %v536, %v537
      %v539 = vrot.slane %v538, 1
      %v540 = vadd.f32 %v538, %v539
      %v541 = vsel %vm290, %v532, 0.0
      %v542 = vrot.slane %v541, 4
      %v543 = vadd.f32 %v541, %v542
      %v544 = vrot.slane %v543, 2
      %v545 = vadd.f32 %v543, %v544
      %v546 = vrot.slane %v545, 1
      %v547 = vadd.f32 %v545, %v546
      %v548 = vsel %vm511, %v530, 0.0
      %v549 = vrot.slane %v548, 4
      %v550 = vadd.f32 %v548, %v549
      %v551 = vrot.slane %v550, 2
      %v552 = vadd.f32 %v550, %v551
      %v553 = vrot.slane %v552, 1
      %v554 = vadd.f32 %v552, %v553
      %v555 = vmul.f32 %v540, %v519
      %v556 = vmul.f32 %v547, %v519
      %v557 = vmul.f32 %v554, %v519
      %v558 = vadd.f32 %v555, 1e-06
      %v559 = vadd.f32 %v556, 1e-06
      %v560 = vadd.f32 %v557, 1e-06
      %v561 = vrsqrt.pop %v558
      %v562 = vrsqrt.pop %v559
      %v563 = vrsqrt.pop %v560
      %v566 = vcombine.low %v561, %v562
      %v568 = vmul.f32 %v527, %v566
      %v569 = vmul.f32 %v528, %v563
      %v570 = vld [vmem:[%s2] sm:$0xff]
      %v571 = vld [vmem:[%s3] sm:$0xff]
      %573 = vset.pattern.permute.xlu0 0
      %574 = vperm.xlu0 %573, %v571
      %v575 = vpop.permute.xlu0 %574
      %v579 = vcombine.high %v568, %v568
      %vm580 = vcmask 31744
      %v582 = vsel %vm580, %v570, 0
      %v584 = vsel %vm290, %v568, 0
      %v586 = vsel %vm290, %v579, 0
      %v588 = vsel %vm290, %v569, 0
      %590 = vmatprep.subr.mxu0 %v586
      %591 = vmatpush1.msra.mxu0 %v584
      %592 = vmatprep.subr.mxu0 0.0
      %593 = vmatpush1.msra.mxu0 0.0
      %594 = vmatprep.subr.mxu0 0.0
      %595 = vmatpush1.msra.mxu0 0.0
      %596 = vmatprep.subr.mxu0 0.0
      %597 = vmatpush1.msra.mxu0 0.0
      %598 = vmatprep.subr.mxu0 0.0
      %599 = vmatpush1.msra.mxu0 0.0
      %600 = vmatprep.subr.mxu0 0.0
      %601 = vmatpush1.msra.mxu0 0.0
      %602 = vmatprep.subr.mxu0 0.0
      %603 = vmatpush1.msra.mxu0 0.0
      %604 = vmatprep.subr.mxu0 0.0
      %605 = vmatpush1.msra.mxu0 0.0
      %606 = vmatprep.subr.mxu0 0.0
      %607 = vmatpush1.msra.mxu0 0.0
      %608 = vmatprep.subr.mxu0 0.0
      %609 = vmatpush1.msra.mxu0 0.0
      %610 = vmatprep.subr.mxu0 0.0
      %611 = vmatpush1.msra.mxu0 0.0
      %612 = vmatprep.subr.mxu0 0.0
      %613 = vmatpush1.msra.mxu0 0.0
      %614 = vmatprep.subr.mxu0 0.0
      %615 = vmatpush1.msra.mxu0 0.0
      %616 = vmatprep.subr.mxu0 0.0
      %617 = vmatpush1.msra.mxu0 0.0
      %618 = vmatprep.subr.mxu0 0.0
      %619 = vmatpush1.msra.mxu0 0.0
      %620 = vmatprep.subr.mxu0 0.0
      %621 = vmatpush1.msra.mxu0 0.0
      %622 = vmatprep.subr.mxu0 0.0
      %623 = vmatpush1.msra.mxu0 0.0
      %624 = vmatprep.subr.mxu0 0.0
      %625 = vmatpush1.msra.mxu0 0.0
      %626 = vmatprep.subr.mxu0 0.0
      %627 = vmatpush1.msra.mxu0 0.0
      %628 = vmatprep.subr.mxu0 0.0
      %629 = vmatpush1.msra.mxu0 0.0
      %630 = vmatprep.subr.mxu0 0.0
      %631 = vmatpush1.msra.mxu0 0.0
      %632 = vmatprep.subr.mxu0 0.0
      %633 = vmatpush1.msra.mxu0 0.0
      %634 = vmatprep.subr.mxu0 0.0
      %635 = vmatpush1.msra.mxu0 0.0
      %636 = vmatprep.subr.mxu0 0.0
      %637 = vmatpush1.msra.mxu0 0.0
      %638 = vmatprep.subr.mxu0 0.0
      %639 = vmatpush1.msra.mxu0 0.0
      %640 = vmatprep.subr.mxu0 0.0
      %641 = vmatpush1.msra.mxu0 0.0
      %642 = vmatprep.subr.mxu0 0.0
      %643 = vmatpush1.msra.mxu0 0.0
      %644 = vmatprep.subr.mxu0 0.0
      %645 = vmatpush1.msra.mxu0 0.0
      %646 = vmatprep.subr.mxu0 0.0
      %647 = vmatpush1.msra.mxu0 0.0
      %648 = vmatprep.subr.mxu0 0.0
      %649 = vmatpush1.msra.mxu0 0.0
      %650 = vmatprep.subr.mxu0 0.0
      %651 = vmatpush1.msra.mxu0 0.0
      %652 = vmatprep.subr.mxu0 0.0
      %653 = vmatpush1.msra.mxu0 0.0
      %654 = vmatprep.mubr.f32.mxu0 0.0
      %655 = vmatmul.mubr.f32.gmra.mrb[0].mxu0 %v582
      %v656 = vpop.f32.mrb[0].mxu0
      %v657 = vadd.f32 %v575, %v656
      %v658 = vpop.f32.mrb[0].mxu0
      %v659 = vadd.f32 %v575, %v658
      %660 = vdwg.mxu0
      %661 = vmatprep.subr.mxu0 0.0
      %662 = vmatpush1.msra.mxu0 %v588
      %663 = vmatprep.subr.mxu0 0.0
      %664 = vmatpush1.msra.mxu0 0.0
      %665 = vmatprep.subr.mxu0 0.0
      %666 = vmatpush1.msra.mxu0 0.0
      %667 = vmatprep.subr.mxu0 0.0
      %668 = vmatpush1.msra.mxu0 0.0
      %669 = vmatprep.subr.mxu0 0.0
      %670 = vmatpush1.msra.mxu0 0.0
      %671 = vmatprep.subr.mxu0 0.0
      %672 = vmatpush1.msra.mxu0 0.0
      %673 = vmatprep.subr.mxu0 0.0
      %674 = vmatpush1.msra.mxu0 0.0
      %675 = vmatprep.subr.mxu0 0.0
      %676 = vmatpush1.msra.mxu0 0.0
      %677 = vmatprep.subr.mxu0 0.0
      %678 = vmatpush1.msra.mxu0 0.0
      %679 = vmatprep.subr.mxu0 0.0
      %680 = vmatpush1.msra.mxu0 0.0
      %681 = vmatprep.subr.mxu0 0.0
      %682 = vmatpush1.msra.mxu0 0.0
      %683 = vmatprep.subr.mxu0 0.0
      %684 = vmatpush1.msra.mxu0 0.0
      %685 = vmatprep.subr.mxu0 0.0
      %686 = vmatpush1.msra.mxu0 0.0
      %687 = vmatprep.subr.mxu0 0.0
      %688 = vmatpush1.msra.mxu0 0.0
      %689 = vmatprep.subr.mxu0 0.0
      %690 = vmatpush1.msra.mxu0 0.0
      %691 = vmatprep.subr.mxu0 0.0
      %692 = vmatpush1.msra.mxu0 0.0
      %693 = vmatprep.subr.mxu0 0.0
      %694 = vmatpush1.msra.mxu0 0.0
      %695 = vmatprep.subr.mxu0 0.0
      %696 = vmatpush1.msra.mxu0 0.0
      %697 = vmatprep.subr.mxu0 0.0
      %698 = vmatpush1.msra.mxu0 0.0
      %699 = vmatprep.subr.mxu0 0.0
      %700 = vmatpush1.msra.mxu0 0.0
      %701 = vmatprep.subr.mxu0 0.0
      %702 = vmatpush1.msra.mxu0 0.0
      %703 = vmatprep.subr.mxu0 0.0
      %704 = vmatpush1.msra.mxu0 0.0
      %705 = vmatprep.subr.mxu0 0.0
      %706 = vmatpush1.msra.mxu0 0.0
      %707 = vmatprep.subr.mxu0 0.0
      %708 = vmatpush1.msra.mxu0 0.0
      %709 = vmatprep.subr.mxu0 0.0
      %710 = vmatpush1.msra.mxu0 0.0
      %711 = vmatprep.subr.mxu0 0.0
      %712 = vmatpush1.msra.mxu0 0.0
      %713 = vmatprep.subr.mxu0 0.0
      %714 = vmatpush1.msra.mxu0 0.0
      %715 = vmatprep.subr.mxu0 0.0
      %716 = vmatpush1.msra.mxu0 0.0
      %717 = vmatprep.subr.mxu0 0.0
      %718 = vmatpush1.msra.mxu0 0.0
      %719 = vmatprep.subr.mxu0 0.0
      %720 = vmatpush1.msra.mxu0 0.0
      %721 = vmatprep.subr.mxu0 0.0
      %722 = vmatpush1.msra.mxu0 0.0
      %723 = vmatprep.subr.mxu0 0.0
      %724 = vmatpush1.msra.mxu0 0.0
      %725 = vmatprep.mubr.f32.mxu0 0.0
      %726 = vmatmul.mubr.f32.gmra.mrb[0].mxu0 %v582
      %v727 = vpop.f32.mrb[0].mxu0
      %v728 = vadd.f32 %v575, %v727
      %v729 = vpop.f32.mrb[0].mxu0
      %730 = vdwg.mxu0
      %v731 = vmul.f32 %v657, 0.5
      %v732 = vmul.f32 %v659, 0.5
      %v733 = vmul.f32 %v728, 0.5
      %v734 = vmul.f32 %v657, 0.70710677
      %v735 = vmul.f32 %v659, 0.70710677
      %v736 = vmul.f32 %v728, 0.70710677
      %v737 = verf.f32.pop %v734
      %v738 = verf.f32.pop %v735
      %v739 = verf.f32.pop %v736
      %v740 = vadd.f32 %v737, 1.0
      %v741 = vadd.f32 %v738, 1.0
      %v742 = vadd.f32 %v739, 1.0
      %v743 = vmul.f32 %v731, %v740
      %v744 = vmul.f32 %v732, %v741
      %v745 = vmul.f32 %v733, %v742
      %v746 = vld [vmem:[%s4] sm:$0xf]
      %v747 = vld [vmem:[%s5] sm:$0xf]
      %749 = vset.pattern.permute.xlu0 0
      %750 = vperm.xlu0 %749, %v747
      %v751 = vpop.permute.xlu0 %750
      %vm753 = vcmask 64512
      %v755 = vsel %vm753, %v746, 0
      %757 = vmatprep.subr.mxu0 %v744
      %758 = vmatpush1.msra.mxu0 %v743
      %759 = vmatprep.subr.mxu0 0.0
      %760 = vmatpush1.msra.mxu0 0.0
      %761 = vmatprep.subr.mxu0 0.0
      %762 = vmatpush1.msra.mxu0 0.0
      %763 = vmatprep.subr.mxu0 0.0
      %764 = vmatpush1.msra.mxu0 0.0
      %765 = vmatprep.subr.mxu0 0.0
      %766 = vmatpush1.msra.mxu0 0.0
      %767 = vmatprep.subr.mxu0 0.0
      %768 = vmatpush1.msra.mxu0 0.0
      %769 = vmatprep.subr.mxu0 0.0
      %770 = vmatpush1.msra.mxu0 0.0
      %771 = vmatprep.subr.mxu0 0.0
      %772 = vmatpush1.msra.mxu0 0.0
      %773 = vmatprep.subr.mxu0 0.0
      %774 = vmatpush1.msra.mxu0 0.0
      %775 = vmatprep.subr.mxu0 0.0
      %776 = vmatpush1.msra.mxu0 0.0
      %777 = vmatprep.subr.mxu0 0.0
      %778 = vmatpush1.msra.mxu0 0.0
      %779 = vmatprep.subr.mxu0 0.0
      %780 = vmatpush1.msra.mxu0 0.0
      %781 = vmatprep.subr.mxu0 0.0
      %782 = vmatpush1.msra.mxu0 0.0
      %783 = vmatprep.subr.mxu0 0.0
      %784 = vmatpush1.msra.mxu0 0.0
      %785 = vmatprep.subr.mxu0 0.0
      %786 = vmatpush1.msra.mxu0 0.0
      %787 = vmatprep.subr.mxu0 0.0
      %788 = vmatpush1.msra.mxu0 0.0
      %789 = vmatprep.subr.mxu0 0.0
      %790 = vmatpush1.msra.mxu0 0.0
      %791 = vmatprep.subr.mxu0 0.0
      %792 = vmatpush1.msra.mxu0 0.0
      %793 = vmatprep.subr.mxu0 0.0
      %794 = vmatpush1.msra.mxu0 0.0
      %795 = vmatprep.subr.mxu0 0.0
      %796 = vmatpush1.msra.mxu0 0.0
      %797 = vmatprep.subr.mxu0 0.0
      %798 = vmatpush1.msra.mxu0 0.0
      %799 = vmatprep.subr.mxu0 0.0
      %800 = vmatpush1.msra.mxu0 0.0
      %801 = vmatprep.subr.mxu0 0.0
      %802 = vmatpush1.msra.mxu0 0.0
      %803 = vmatprep.subr.mxu0 0.0
      %804 = vmatpush1.msra.mxu0 0.0
      %805 = vmatprep.subr.mxu0 0.0
      %806 = vmatpush1.msra.mxu0 0.0
      %807 = vmatprep.subr.mxu0 0.0
      %808 = vmatpush1.msra.mxu0 0.0
      %809 = vmatprep.subr.mxu0 0.0
      %810 = vmatpush1.msra.mxu0 0.0
      %811 = vmatprep.subr.mxu0 0.0
      %812 = vmatpush1.msra.mxu0 0.0
      %813 = vmatprep.subr.mxu0 0.0
      %814 = vmatpush1.msra.mxu0 0.0
      %815 = vmatprep.subr.mxu0 0.0
      %816 = vmatpush1.msra.mxu0 0.0
      %817 = vmatprep.subr.mxu0 0.0
      %818 = vmatpush1.msra.mxu0 0.0
      %819 = vmatprep.subr.mxu0 0.0
      %820 = vmatpush1.msra.mxu0 0.0
      %821 = vmatprep.mubr.f32.mxu0 0.0
      %822 = vmatmul.mubr.f32.gmra.mrb[0].mxu0 %v755
      %v823 = vpop.f32.mrb[0].mxu0
      %v824 = vadd.f32 %v751, %v823
      %v825 = vpop.f32.mrb[0].mxu0
      %v826 = vadd.f32 %v751, %v825
      %827 = vdwg.mxu0
      %828 = vmatprep.subr.mxu0 0.0
      %829 = vmatpush1.msra.mxu0 %v745
      %830 = vmatprep.subr.mxu0 0.0
      %831 = vmatpush1.msra.mxu0 0.0
      %832 = vmatprep.subr.mxu0 0.0
      %833 = vmatpush1.msra.mxu0 0.0
      %834 = vmatprep.subr.mxu0 0.0
      %835 = vmatpush1.msra.mxu0 0.0
      %836 = vmatprep.subr.mxu0 0.0
      %837 = vmatpush1.msra.mxu0 0.0
      %838 = vmatprep.subr.mxu0 0.0
      %839 = vmatpush1.msra.mxu0 0.0
      %840 = vmatprep.subr.mxu0 0.0
      %841 = vmatpush1.msra.mxu0 0.0
      %842 = vmatprep.subr.mxu0 0.0
      %843 = vmatpush1.msra.mxu0 0.0
      %844 = vmatprep.subr.mxu0 0.0
      %845 = vmatpush1.msra.mxu0 0.0
      %846 = vmatprep.subr.mxu0 0.0
      %847 = vmatpush1.msra.mxu0 0.0
      %848 = vmatprep.subr.mxu0 0.0
      %849 = vmatpush1.msra.mxu0 0.0
      %850 = vmatprep.subr.mxu0 0.0
      %851 = vmatpush1.msra.mxu0 0.0
      %852 = vmatprep.subr.mxu0 0.0
      %853 = vmatpush1.msra.mxu0 0.0
      %854 = vmatprep.subr.mxu0 0.0
      %855 = vmatpush1.msra.mxu0 0.0
      %856 = vmatprep.subr.mxu0 0.0
      %857 = vmatpush1.msra.mxu0 0.0
      %858 = vmatprep.subr.mxu0 0.0
      %859 = vmatpush1.msra.mxu0 0.0
      %860 = vmatprep.subr.mxu0 0.0
      %861 = vmatpush1.msra.mxu0 0.0
      %862 = vmatprep.subr.mxu0 0.0
      %863 = vmatpush1.msra.mxu0 0.0
      %864 = vmatprep.subr.mxu0 0.0
      %865 = vmatpush1.msra.mxu0 0.0
      %866 = vmatprep.subr.mxu0 0.0
      %867 = vmatpush1.msra.mxu0 0.0
      %868 = vmatprep.subr.mxu0 0.0
      %869 = vmatpush1.msra.mxu0 0.0
      %870 = vmatprep.subr.mxu0 0.0
      %871 = vmatpush1.msra.mxu0 0.0
      %872 = vmatprep.subr.mxu0 0.0
      %873 = vmatpush1.msra.mxu0 0.0
      %874 = vmatprep.subr.mxu0 0.0
      %875 = vmatpush1.msra.mxu0 0.0
      %876 = vmatprep.subr.mxu0 0.0
      %877 = vmatpush1.msra.mxu0 0.0
      %878 = vmatprep.subr.mxu0 0.0
      %879 = vmatpush1.msra.mxu0 0.0
      %880 = vmatprep.subr.mxu0 0.0
      %881 = vmatpush1.msra.mxu0 0.0
      %882 = vmatprep.subr.mxu0 0.0
      %883 = vmatpush1.msra.mxu0 0.0
      %884 = vmatprep.subr.mxu0 0.0
      %885 = vmatpush1.msra.mxu0 0.0
      %886 = vmatprep.subr.mxu0 0.0
      %887 = vmatpush1.msra.mxu0 0.0
      %888 = vmatprep.subr.mxu0 0.0
      %889 = vmatpush1.msra.mxu0 0.0
      %890 = vmatprep.subr.mxu0 0.0
      %891 = vmatpush1.msra.mxu0 0.0
      %892 = vmatprep.mubr.f32.mxu0 0.0
      %893 = vmatmul.mubr.f32.gmra.mrb[0].mxu0 %v755
      %v894 = vpop.f32.mrb[0].mxu0
      %v895 = vadd.f32 %v751, %v894
      %v896 = vpop.f32.mrb[0].mxu0
      %897 = vdwg.mxu0
      %v901 = vcombine.low %v824, %v826
      %902 = vrot.lane.b32.xlu0 %v901, 19
      %v903 = vpop.permute.xlu0 %902
      %904 = vrot.lane.b32.xlu0 %v895, 19
      %v905 = vpop.permute.xlu0 %904
      %v906 = vrot.slane %v903, 4
      %vm907 = vcmask 154624
      %v908 = vsel %vm907, %v906, %v903
      %v909 = vsel %vm907, %v906, %v905
      %v912 = vadd.f32 %v252, %v908
      %v913 = vadd.f32 %v253, %v909
      %916 = vrot.lane.b32.xlu0 %v912, 109
      %v917 = vpop.permute.xlu0 %916
      %918 = vrot.lane.b32.xlu0 %v913, 109
      %v919 = vpop.permute.xlu0 %918
      %v920 = vrot.slane %v917, 4
      %v921 = vrot.slane %v919, 4
      %v922 = vsel %vm290, %v920, %v921
      %v923 = vsel %vm376, %v917, %v922
      %926 = vst [vmem:[%s251] sm:$0xff] %v923
      %927 = vst.msk [vmem:[%s251 + $0x8] sm:$0xf] %vm511, %v919
      %p928 = scmp.lt.s32.totalorder %s17, 1
      %s929 = scalar_select %p928, %s17, 1
      %s930 = smul.addr %s929, 3
      %s931 = smul.addr %s930, 4
      %s932 = scalar_lea.vmem %s6, %s931
      // Predicated region
      $region45: #{_lambda_.1} parent=43 // pred_check
        %p933 = pneg %p166
      $region46: #{_lambda_.1} parent=43 // pred_check_branch
        %935 = sbr.rel (%p933) target = $region48
      $region47: #{_lambda_.1} parent=43 // pred_region
        _
      $region48: #{_lambda_.1} parent=43 // pred_fallthru
        _
    $region44: #{_lambda_.1} parent=5 // pred_fallthru
      _
    %p936 = scmp.le.s32.totalorder 2, %s12
    // Predicated region
    $region49: #{_lambda_.1} parent=5 // pred_check
      %p937 = pneg %p936
    $region50: #{_lambda_.1} parent=5 // pred_check_branch
      %939 = sbr.rel (%p937) target = $region52
    $region51: #{_lambda_.1} parent=5 // pred_region
      %s940 = ssub.s32 %s12, 2
      // Predicated region
      $region53: #{_lambda_.1} parent=51 // pred_check
        %p941 = pneg %p172
      $region54: #{_lambda_.1} parent=51 // pred_check_branch
        %943 = sbr.rel (%p941) target = $region56
      $region55: #{_lambda_.1} parent=51 // pred_region
        %p944 = scmp.lt.s32.totalorder %s18, 1
        %s945 = scalar_select %p944, %s18, 1
        %s946 = smul.addr %s945, 3
        %s947 = smul.addr %s946, 4
        %s948 = scalar_lea.vmem %s6, %s947
      $region56: #{_lambda_.1} parent=51 // pred_fallthru
        _
    $region52: #{_lambda_.1} parent=5 // pred_fallthru
      _
  $region6: #{_lambda_.1} parent=0 // loop_footer
    %s16 = sadd.s32 1, %s12
  $region7: #{_lambda_.1} parent=0 // loop_footer_branch
    %11 = sbr.rel target = $region3
  $region8: #{_lambda_.1} parent=0 // loop_exit
    _

</llo_original>
